<compile_context>
chip_gen: v6e
topology: v6e:2x2x1
jax: 0.10.0
libtpu: 0.0.40
codegen_flags: <defaults>
</compile_context>

<pallas_src>
import math
from functools import partial

import jax
import jax.numpy as jnp
from jax.experimental import pallas as pl
from jax.experimental.pallas import tpu as pltpu

_LANE = 128     # last block dim multiple
_SUBLANE = 8    # second-to-last block dim multiple


def _round_up(x, m):
    return ((x + m - 1) // m) * m


def _leaky_relu(x, slope=0.2):
    return jnp.where(x > 0, x, slope * x)


def mapping_network_kernel(z_ref,
                           w1_ref, b1_ref,
                           w2_ref, b2_ref,
                           w3_ref, b3_ref,
                           w4_ref, b4_ref,
                           out_ref):
    """Fused 4-layer MLP on one batch tile.

    bf16 matmul inputs, f32 accumulation & element-wise math; writes one
    lane-dense (block_b, out_pad) slab (split into freq/phase in the wrapper).
    """
    h = jnp.dot(z_ref[...], w1_ref[...],
                preferred_element_type=jnp.float32) + b1_ref[...]
    h = _leaky_relu(h)
    h = jnp.dot(h.astype(jnp.bfloat16), w2_ref[...],
                preferred_element_type=jnp.float32) + b2_ref[...]
    h = _leaky_relu(h)
    h = jnp.dot(h.astype(jnp.bfloat16), w3_ref[...],
                preferred_element_type=jnp.float32) + b3_ref[...]
    h = _leaky_relu(h)
    out = jnp.dot(h.astype(jnp.bfloat16), w4_ref[...],
                  preferred_element_type=jnp.float32) + b4_ref[...]
    out_ref[...] = out.astype(out_ref.dtype)


def _choose_block_b(b_pad, z_pad, h_pad, o_pad, vmem_budget=16 << 20):
    """Batch tile: multiple of 8, fits a conservative VMEM budget (v7x-safe),
    capped so there are >=2 grid steps when the batch allows (megacore)."""
    # weights (bf16) + biases (f32); resident (constant index map) but budgeted x2
    fixed = 2 * (2 * (z_pad * h_pad + 2 * h_pad * h_pad + h_pad * o_pad)
                 + 4 * (3 * h_pad + o_pad))
    # per batch row: double-buffered z (bf16) + out (f32) tiles, ~3 f32 hidden temps
    per_row = 2 * (2 * z_pad + 4 * o_pad) + 3 * 4 * h_pad
    budget_rows = max((vmem_budget - fixed) // per_row, _SUBLANE)
    block_b = min(512, b_pad, budget_rows)
    if b_pad >= 2 * _SUBLANE:
        # keep at least 2 grid steps so both v7x TensorCores get work
        block_b = min(block_b, _round_up(pl.cdiv(b_pad, 2), _SUBLANE))
    return max(_SUBLANE, (block_b // _SUBLANE) * _SUBLANE)


@partial(jax.jit, static_argnames=("block_b",))
def _mapping_network_impl(z, params, block_b):
    (w1, b1), (w2, b2), (w3, b3), (w4, b4) = params
    B, z_dim = z.shape
    hidden = w1.shape[1]
    out_dim = w4.shape[1]
    half = out_dim // 2

    z_pad = _round_up(z_dim, _LANE)
    h_pad = _round_up(hidden, _LANE)
    o_pad = _round_up(out_dim, _LANE)
    b_pad = _round_up(B, block_b)
    grid = (b_pad // block_b,)

    def pad2(a, rows, cols):
        return jnp.pad(a, ((0, rows - a.shape[0]), (0, cols - a.shape[1])))

    zp = pad2(z, b_pad, z_pad).astype(jnp.bfloat16)
    w1p = pad2(w1, z_pad, h_pad).astype(jnp.bfloat16)
    w2p = pad2(w2, h_pad, h_pad).astype(jnp.bfloat16)
    w3p = pad2(w3, h_pad, h_pad).astype(jnp.bfloat16)
    w4p = pad2(w4, h_pad, o_pad).astype(jnp.bfloat16)
    b1p = pad2(b1, 1, h_pad)
    b2p = pad2(b2, 1, h_pad)
    b3p = pad2(b3, 1, h_pad)
    b4p = pad2(b4, 1, o_pad)

    def rep(shape):
        # weights/biases: same block every grid step (resident / replicated)
        return pl.BlockSpec(shape, lambda i: (0, 0))

    in_specs = [
        pl.BlockSpec((block_b, z_pad), lambda i: (i, 0)),   # z tile over batch
        rep(w1p.shape), rep(b1p.shape),
        rep(w2p.shape), rep(b2p.shape),
        rep(w3p.shape), rep(b3p.shape),
        rep(w4p.shape), rep(b4p.shape),
    ]
    out_specs = pl.BlockSpec((block_b, o_pad), lambda i: (i, 0))

    flops = 2 * b_pad * (z_pad * h_pad + 2 * h_pad * h_pad + h_pad * o_pad)
    bytes_accessed = (zp.size * 2
                      + (w1p.size + w2p.size + w3p.size + w4p.size) * 2
                      + (b1p.size + b2p.size + b3p.size + b4p.size) * 4
                      + b_pad * o_pad * 4)
    cost = pl.CostEstimate(flops=flops, transcendentals=0,
                           bytes_accessed=bytes_accessed)

    out = pl.pallas_call(
        mapping_network_kernel,
        out_shape=jax.ShapeDtypeStruct((b_pad, o_pad), jnp.float32),
        grid=grid,
        in_specs=in_specs,
        out_specs=out_specs,
        compiler_params=pltpu.CompilerParams(
            dimension_semantics=("parallel",)),
        cost_estimate=cost,
    )(zp, w1p, b1p, w2p, b2p, w3p, b3p, w4p, b4p)

    out = out[:B, :out_dim]           # strip batch/feature padding (fused by XLA)
    return out[:, :half], out[:, half:]


def mapping_network_forward(z, params, *, block_b=None):
    """z: (B, z_dim) float32. Returns (frequencies, phase_shifts), each (B, out_dim//2)."""
    (w1, _), (_, _), (_, _), (w4, _) = params
    B, z_dim = z.shape
    z_pad = _round_up(z_dim, _LANE)
    h_pad = _round_up(w1.shape[1], _LANE)
    o_pad = _round_up(w4.shape[1], _LANE)
    if block_b is None:
        block_b = _choose_block_b(_round_up(B, _SUBLANE), z_pad, h_pad, o_pad)
    block_b = max(_SUBLANE, _round_up(block_b, _SUBLANE))
    return _mapping_network_impl(z, params, block_b)


def init_mapping_network_params(key, z_dim, map_hidden_dim, map_output_dim):
    """Matches the PyTorch module's init: kaiming_normal_(a=0.2, fan_in) on every
    Linear weight, last weight *= 0.25, biases ~ U(-1/sqrt(fan_in), 1/sqrt(fan_in))."""
    dims = [(z_dim, map_hidden_dim),
            (map_hidden_dim, map_hidden_dim),
            (map_hidden_dim, map_hidden_dim),
            (map_hidden_dim, map_output_dim)]
    a = 0.2
    gain = math.sqrt(2.0 / (1.0 + a * a))
    params = []
    keys = jax.random.split(key, 2 * len(dims))
    for li, (fan_in, fan_out) in enumerate(dims):
        wk, bk = keys[2 * li], keys[2 * li + 1]
        std = gain / math.sqrt(fan_in)
        # Stored as (in, out) so the kernel does x @ W (transpose of PyTorch (out, in)).
        w = std * jax.random.normal(wk, (fan_in, fan_out), dtype=jnp.float32)
        if li == len(dims) - 1:
            w = w * 0.25
        bound = 1.0 / math.sqrt(fan_in)
        b = jax.random.uniform(bk, (1, fan_out), minval=-bound, maxval=bound,
                               dtype=jnp.float32)
        params.append((w, b))
    return params


def mapping_network_ref(z, params):
    """Pure-JAX reference mirroring the kernel's bf16-matmul / f32-accumulate numerics."""
    def lin(x, w, b):
        return jnp.dot(x.astype(jnp.bfloat16), w.astype(jnp.bfloat16),
                       preferred_element_type=jnp.float32) + b
    (w1, b1), (w2, b2), (w3, b3), (w4, b4) = params
    h = _leaky_relu(lin(z, w1, b1))
    h = _leaky_relu(lin(h, w2, b2))
    h = _leaky_relu(lin(h, w3, b3))
    out = lin(h, w4, b4)
    half = out.shape[-1] // 2
    return out[..., :half], out[..., half:]


if __name__ == "__main__":
    # Small shapes consistent with the module's forward: z is (batch, z_dim).
    B, Z_DIM, HIDDEN, OUT_DIM = 8, 32, 64, 64

    key = jax.random.PRNGKey(0)
    pkey, zkey = jax.random.split(key)
    params = init_mapping_network_params(pkey, Z_DIM, HIDDEN, OUT_DIM)
    z = jax.random.normal(zkey, (B, Z_DIM), dtype=jnp.float32)

    freq, phase = mapping_network_forward(z, params)
    jax.block_until_ready((freq, phase))

    freq_ref, phase_ref = mapping_network_ref(z, params)
    assert freq.shape == (B, OUT_DIM // 2) and phase.shape == (B, OUT_DIM // 2)
    assert jnp.allclose(freq, freq_ref, atol=1e-3, rtol=1e-3)
    assert jnp.allclose(phase, phase_ref, atol=1e-3, rtol=1e-3)

    print("KERNEL_OK")
</pallas_src>

<mosaic_0001>
module attributes {stable_mosaic.version = 11 : i64} {
  func.func @mapping_network_kernel(%arg0: i32, %arg1: memref<8x128xbf16, #tpu.memory_space<vmem>>, %arg2: memref<128x128xbf16, #tpu.memory_space<vmem>>, %arg3: memref<1x128xf32, #tpu.memory_space<vmem>>, %arg4: memref<128x128xbf16, #tpu.memory_space<vmem>>, %arg5: memref<1x128xf32, #tpu.memory_space<vmem>>, %arg6: memref<128x128xbf16, #tpu.memory_space<vmem>>, %arg7: memref<1x128xf32, #tpu.memory_space<vmem>>, %arg8: memref<128x128xbf16, #tpu.memory_space<vmem>>, %arg9: memref<1x128xf32, #tpu.memory_space<vmem>>, %arg10: memref<8x128xf32, #tpu.memory_space<vmem>>) attributes {dimension_semantics = [#tpu.dimension_semantics<parallel>], iteration_bounds = array<i64: 1>, scalar_prefetch = 0 : i64, scratch_operands = 0 : i64, tpu.core_type = #tpu.core_type<tc>, window_params = [{transform_indices = @transform_0, window_bounds = array<i64: 8, 128>}, {pipeline_mode = #tpu.pipeline_mode<synchronous>, transform_indices = @transform_1, window_bounds = array<i64: 128, 128>}, {pipeline_mode = #tpu.pipeline_mode<synchronous>, transform_indices = @transform_2, window_bounds = array<i64: 1, 128>}, {pipeline_mode = #tpu.pipeline_mode<synchronous>, transform_indices = @transform_3, window_bounds = array<i64: 128, 128>}, {pipeline_mode = #tpu.pipeline_mode<synchronous>, transform_indices = @transform_4, window_bounds = array<i64: 1, 128>}, {pipeline_mode = #tpu.pipeline_mode<synchronous>, transform_indices = @transform_5, window_bounds = array<i64: 128, 128>}, {pipeline_mode = #tpu.pipeline_mode<synchronous>, transform_indices = @transform_6, window_bounds = array<i64: 1, 128>}, {pipeline_mode = #tpu.pipeline_mode<synchronous>, transform_indices = @transform_7, window_bounds = array<i64: 128, 128>}, {pipeline_mode = #tpu.pipeline_mode<synchronous>, transform_indices = @transform_8, window_bounds = array<i64: 1, 128>}, {transform_indices = @transform_9, window_bounds = array<i64: 8, 128>}]} {
    %c0 = arith.constant 0 : index
    %c0_0 = arith.constant 0 : index
    %0 = vector.load %arg1[%c0, %c0_0] : memref<8x128xbf16, #tpu.memory_space<vmem>>, vector<8x128xbf16>
    %c0_1 = arith.constant 0 : index
    %c0_2 = arith.constant 0 : index
    %1 = vector.load %arg2[%c0_1, %c0_2] : memref<128x128xbf16, #tpu.memory_space<vmem>>, vector<128x128xbf16>
    %cst = arith.constant dense<0.000000e+00> : vector<8x128xf32>
    %2 = tpu.matmul %0, %1, %cst {dimension_numbers = #tpu.dot_dimension_numbers<[1], [0], [0], [1], [0, 0, 1, 1], [], []>} : vector<8x128xbf16>, vector<128x128xbf16>, vector<8x128xf32> -> vector<8x128xf32>
    %c0_3 = arith.constant 0 : index
    %c0_4 = arith.constant 0 : index
    %3 = vector.load %arg3[%c0_3, %c0_4] : memref<1x128xf32, #tpu.memory_space<vmem>>, vector<1x128xf32>
    %4 = vector.broadcast %3 : vector<1x128xf32> to vector<8x128xf32>
    %5 = arith.addf %2, %4 : vector<8x128xf32>
    %cst_5 = arith.constant 0.000000e+00 : f32
    %6 = vector.broadcast %cst_5 : f32 to vector<8x128xf32>
    %7 = arith.cmpf ogt, %5, %6 : vector<8x128xf32>
    %cst_6 = arith.constant 2.000000e-01 : f32
    %8 = vector.broadcast %cst_6 : f32 to vector<8x128xf32>
    %9 = arith.mulf %8, %5 : vector<8x128xf32>
    %10 = arith.select %7, %5, %9 : vector<8x128xi1>, vector<8x128xf32>
    %11 = arith.truncf %10 : vector<8x128xf32> to vector<8x128xbf16>
    %c0_7 = arith.constant 0 : index
    %c0_8 = arith.constant 0 : index
    %12 = vector.load %arg4[%c0_7, %c0_8] : memref<128x128xbf16, #tpu.memory_space<vmem>>, vector<128x128xbf16>
    %cst_9 = arith.constant dense<0.000000e+00> : vector<8x128xf32>
    %13 = tpu.matmul %11, %12, %cst_9 {dimension_numbers = #tpu.dot_dimension_numbers<[1], [0], [0], [1], [0, 0, 1, 1], [], []>} : vector<8x128xbf16>, vector<128x128xbf16>, vector<8x128xf32> -> vector<8x128xf32>
    %c0_10 = arith.constant 0 : index
    %c0_11 = arith.constant 0 : index
    %14 = vector.load %arg5[%c0_10, %c0_11] : memref<1x128xf32, #tpu.memory_space<vmem>>, vector<1x128xf32>
    %15 = vector.broadcast %14 : vector<1x128xf32> to vector<8x128xf32>
    %16 = arith.addf %13, %15 : vector<8x128xf32>
    %cst_12 = arith.constant 0.000000e+00 : f32
    %17 = vector.broadcast %cst_12 : f32 to vector<8x128xf32>
    %18 = arith.cmpf ogt, %16, %17 : vector<8x128xf32>
    %cst_13 = arith.constant 2.000000e-01 : f32
    %19 = vector.broadcast %cst_13 : f32 to vector<8x128xf32>
    %20 = arith.mulf %19, %16 : vector<8x128xf32>
    %21 = arith.select %18, %16, %20 : vector<8x128xi1>, vector<8x128xf32>
    %22 = arith.truncf %21 : vector<8x128xf32> to vector<8x128xbf16>
    %c0_14 = arith.constant 0 : index
    %c0_15 = arith.constant 0 : index
    %23 = vector.load %arg6[%c0_14, %c0_15] : memref<128x128xbf16, #tpu.memory_space<vmem>>, vector<128x128xbf16>
    %cst_16 = arith.constant dense<0.000000e+00> : vector<8x128xf32>
    %24 = tpu.matmul %22, %23, %cst_16 {dimension_numbers = #tpu.dot_dimension_numbers<[1], [0], [0], [1], [0, 0, 1, 1], [], []>} : vector<8x128xbf16>, vector<128x128xbf16>, vector<8x128xf32> -> vector<8x128xf32>
    %c0_17 = arith.constant 0 : index
    %c0_18 = arith.constant 0 : index
    %25 = vector.load %arg7[%c0_17, %c0_18] : memref<1x128xf32, #tpu.memory_space<vmem>>, vector<1x128xf32>
    %26 = vector.broadcast %25 : vector<1x128xf32> to vector<8x128xf32>
    %27 = arith.addf %24, %26 : vector<8x128xf32>
    %cst_19 = arith.constant 0.000000e+00 : f32
    %28 = vector.broadcast %cst_19 : f32 to vector<8x128xf32>
    %29 = arith.cmpf ogt, %27, %28 : vector<8x128xf32>
    %cst_20 = arith.constant 2.000000e-01 : f32
    %30 = vector.broadcast %cst_20 : f32 to vector<8x128xf32>
    %31 = arith.mulf %30, %27 : vector<8x128xf32>
    %32 = arith.select %29, %27, %31 : vector<8x128xi1>, vector<8x128xf32>
    %33 = arith.truncf %32 : vector<8x128xf32> to vector<8x128xbf16>
    %c0_21 = arith.constant 0 : index
    %c0_22 = arith.constant 0 : index
    %34 = vector.load %arg8[%c0_21, %c0_22] : memref<128x128xbf16, #tpu.memory_space<vmem>>, vector<128x128xbf16>
    %cst_23 = arith.constant dense<0.000000e+00> : vector<8x128xf32>
    %35 = tpu.matmul %33, %34, %cst_23 {dimension_numbers = #tpu.dot_dimension_numbers<[1], [0], [0], [1], [0, 0, 1, 1], [], []>} : vector<8x128xbf16>, vector<128x128xbf16>, vector<8x128xf32> -> vector<8x128xf32>
    %c0_24 = arith.constant 0 : index
    %c0_25 = arith.constant 0 : index
    %36 = vector.load %arg9[%c0_24, %c0_25] : memref<1x128xf32, #tpu.memory_space<vmem>>, vector<1x128xf32>
    %37 = vector.broadcast %36 : vector<1x128xf32> to vector<8x128xf32>
    %38 = arith.addf %35, %37 : vector<8x128xf32>
    %c0_26 = arith.constant 0 : index
    %c0_27 = arith.constant 0 : index
    %39 = vector.load %arg10[%c0_26, %c0_27] : memref<8x128xf32, #tpu.memory_space<vmem>>, vector<8x128xf32>
    tpu.vector_store %arg10[%c0_26, %c0_27], %38 {strides = array<i32>} : memref<8x128xf32, #tpu.memory_space<vmem>>, vector<8x128xf32>,
    return
  }
  func.func @transform_0(%arg0: i32) -> (i32, i32) {
    %c0_i32 = arith.constant 0 : i32
    %c0_i32_0 = arith.constant 0 : i32
    return %arg0, %c0_i32 : i32, i32
  }
  func.func @transform_1(%arg0: i32) -> (i32, i32) {
    %c0_i32 = arith.constant 0 : i32
    %c0_i32_0 = arith.constant 0 : i32
    %c0_i32_1 = arith.constant 0 : i32
    return %c0_i32, %c0_i32_0 : i32, i32
  }
  func.func @transform_2(%arg0: i32) -> (i32, i32) {
    %c0_i32 = arith.constant 0 : i32
    %c0_i32_0 = arith.constant 0 : i32
    %c0_i32_1 = arith.constant 0 : i32
    return %c0_i32, %c0_i32_0 : i32, i32
  }
  func.func @transform_3(%arg0: i32) -> (i32, i32) {
    %c0_i32 = arith.constant 0 : i32
    %c0_i32_0 = arith.constant 0 : i32
    %c0_i32_1 = arith.constant 0 : i32
    return %c0_i32, %c0_i32_0 : i32, i32
  }
  func.func @transform_4(%arg0: i32) -> (i32, i32) {
    %c0_i32 = arith.constant 0 : i32
    %c0_i32_0 = arith.constant 0 : i32
    %c0_i32_1 = arith.constant 0 : i32
    return %c0_i32, %c0_i32_0 : i32, i32
  }
  func.func @transform_5(%arg0: i32) -> (i32, i32) {
    %c0_i32 = arith.constant 0 : i32
    %c0_i32_0 = arith.constant 0 : i32
    %c0_i32_1 = arith.constant 0 : i32
    return %c0_i32, %c0_i32_0 : i32, i32
  }
  func.func @transform_6(%arg0: i32) -> (i32, i32) {
    %c0_i32 = arith.constant 0 : i32
    %c0_i32_0 = arith.constant 0 : i32
    %c0_i32_1 = arith.constant 0 : i32
    return %c0_i32, %c0_i32_0 : i32, i32
  }
  func.func @transform_7(%arg0: i32) -> (i32, i32) {
    %c0_i32 = arith.constant 0 : i32
    %c0_i32_0 = arith.constant 0 : i32
    %c0_i32_1 = arith.constant 0 : i32
    return %c0_i32, %c0_i32_0 : i32, i32
  }
  func.func @transform_8(%arg0: i32) -> (i32, i32) {
    %c0_i32 = arith.constant 0 : i32
    %c0_i32_0 = arith.constant 0 : i32
    %c0_i32_1 = arith.constant 0 : i32
    return %c0_i32, %c0_i32_0 : i32, i32
  }
  func.func @transform_9(%arg0: i32) -> (i32, i32) {
    %c0_i32 = arith.constant 0 : i32
    %c0_i32_0 = arith.constant 0 : i32
    return %arg0, %c0_i32 : i32, i32
  }
}

</mosaic_0001>

<llo_original>
// kernel: _mapping_network_impl.1
$region0: #{_mapping_network_impl.1}
  #allocation0 [shape = 'u32[]', space=smem, size = 0x4, offset = 0x4, fixed_abs, tag = 'smem constant byte address 0x4 - core index']
  #allocation1 [shape = 'u32[144,128]{1,0:T(1,128)}', space=vmem, size = 0x12000, scoped, tag = 'internal scratch']
  %s0 = inlined_call_operand.vmem [shape: bf16[8,128], index: 0, kind: input, shape index: {}]
  %s1 = inlined_call_operand.vmem [shape: bf16[128,128], index: 1, kind: input, shape index: {}]
  %s2 = inlined_call_operand.vmem [shape: f32[1,128], index: 2, kind: input, shape index: {}]
  %s3 = inlined_call_operand.vmem [shape: bf16[128,128], index: 3, kind: input, shape index: {}]
  %s4 = inlined_call_operand.vmem [shape: f32[1,128], index: 4, kind: input, shape index: {}]
  %s5 = inlined_call_operand.vmem [shape: bf16[128,128], index: 5, kind: input, shape index: {}]
  %s6 = inlined_call_operand.vmem [shape: f32[1,128], index: 6, kind: input, shape index: {}]
  %s7 = inlined_call_operand.vmem [shape: bf16[128,128], index: 7, kind: input, shape index: {}]
  %s8 = inlined_call_operand.vmem [shape: f32[1,128], index: 8, kind: input, shape index: {}]
  %s9 = inlined_call_operand.vmem [shape: f32[8,128], index: 9, kind: output, shape index: {}]
  %s10 = sld [smem:[#allocation0]]
  $region46: #{_mapping_network_impl.1} parent=0
    _
  %s12 = ssub.s32 1, %s10
  %s13 = scalar_select 0, %s12, %s10
  // Predicated region
  $region2: #{_mapping_network_impl.1} parent=0 // pred_check
    _
  $region3: #{_mapping_network_impl.1} parent=0 // pred_check_branch
    %15 = sbr.rel (0) target = $region5
  $region4: #{_mapping_network_impl.1} parent=0 // pred_region
    _
  $region5: #{_mapping_network_impl.1} parent=0 // pred_fallthru
    _
  // Predicated region
  $region6: #{_mapping_network_impl.1} parent=0 // pred_check
    _
  $region7: #{_mapping_network_impl.1} parent=0 // pred_check_branch
    %17 = sbr.rel (0) target = $region9
  $region8: #{_mapping_network_impl.1} parent=0 // pred_region
    _
  $region9: #{_mapping_network_impl.1} parent=0 // pred_fallthru
    _
  // Predicated region
  $region10: #{_mapping_network_impl.1} parent=0 // pred_check
    _
  $region11: #{_mapping_network_impl.1} parent=0 // pred_check_branch
    %19 = sbr.rel (0) target = $region13
  $region12: #{_mapping_network_impl.1} parent=0 // pred_region
    _
  $region13: #{_mapping_network_impl.1} parent=0 // pred_fallthru
    _
  // Predicated region
  $region14: #{_mapping_network_impl.1} parent=0 // pred_check
    _
  $region15: #{_mapping_network_impl.1} parent=0 // pred_check_branch
    %21 = sbr.rel (0) target = $region17
  $region16: #{_mapping_network_impl.1} parent=0 // pred_region
    _
  $region17: #{_mapping_network_impl.1} parent=0 // pred_fallthru
    _
  // Predicated region
  $region18: #{_mapping_network_impl.1} parent=0 // pred_check
    _
  $region19: #{_mapping_network_impl.1} parent=0 // pred_check_branch
    %23 = sbr.rel (0) target = $region21
  $region20: #{_mapping_network_impl.1} parent=0 // pred_region
    _
  $region21: #{_mapping_network_impl.1} parent=0 // pred_fallthru
    _
  // Predicated region
  $region22: #{_mapping_network_impl.1} parent=0 // pred_check
    _
  $region23: #{_mapping_network_impl.1} parent=0 // pred_check_branch
    %25 = sbr.rel (0) target = $region25
  $region24: #{_mapping_network_impl.1} parent=0 // pred_region
    _
  $region25: #{_mapping_network_impl.1} parent=0 // pred_fallthru
    _
  // Predicated region
  $region26: #{_mapping_network_impl.1} parent=0 // pred_check
    _
  $region27: #{_mapping_network_impl.1} parent=0 // pred_check_branch
    %27 = sbr.rel (0) target = $region29
  $region28: #{_mapping_network_impl.1} parent=0 // pred_region
    _
  $region29: #{_mapping_network_impl.1} parent=0 // pred_fallthru
    _
  // Predicated region
  $region30: #{_mapping_network_impl.1} parent=0 // pred_check
    _
  $region31: #{_mapping_network_impl.1} parent=0 // pred_check_branch
    %29 = sbr.rel (0) target = $region33
  $region32: #{_mapping_network_impl.1} parent=0 // pred_region
    _
  $region33: #{_mapping_network_impl.1} parent=0 // pred_fallthru
    _
  // Predicated region
  $region34: #{_mapping_network_impl.1} parent=0 // pred_check
    _
  $region35: #{_mapping_network_impl.1} parent=0 // pred_check_branch
    %31 = sbr.rel (0) target = $region37
  $region36: #{_mapping_network_impl.1} parent=0 // pred_region
    _
  $region37: #{_mapping_network_impl.1} parent=0 // pred_fallthru
    _
  %v33 = vld [vmem:[%s0] sm:$0xf]
  %v34 = vld [vmem:[%s1] sm:$0xf]
  %v35 = vld [vmem:[%s1 + $0x4] sm:$0xf]
  %v36 = vld [vmem:[%s1 + $0x8] sm:$0xf]
  %v37 = vld [vmem:[%s1 + $0xc] sm:$0xf]
  %v38 = vld [vmem:[%s1 + $0x10] sm:$0xf]
  %v39 = vld [vmem:[%s1 + $0x14] sm:$0xf]
  %v40 = vld [vmem:[%s1 + $0x18] sm:$0xf]
  %v41 = vld [vmem:[%s1 + $0x1c] sm:$0xf]
  %v42 = vld [vmem:[%s1 + $0x20] sm:$0xf]
  %v43 = vld [vmem:[%s1 + $0x24] sm:$0xf]
  %v44 = vld [vmem:[%s1 + $0x28] sm:$0xf]
  %v45 = vld [vmem:[%s1 + $0x2c] sm:$0xf]
  %v46 = vld [vmem:[%s1 + $0x30] sm:$0xf]
  %v47 = vld [vmem:[%s1 + $0x34] sm:$0xf]
  %v48 = vld [vmem:[%s1 + $0x38] sm:$0xf]
  %v49 = vld [vmem:[%s1 + $0x3c] sm:$0xf]
  %v50 = vld [vmem:[%s2] sm:$0x1]
  %v52 = vlaneseq
  %v53 = vshrl.u32 %v52, 7
  %v54 = vsub.s32 0, %v53
  %v55 = vrot.slane %v50, %v54
  %v73 = vunpack.c.l.b16 %v34
  %v74 = vunpack.c.l.b16 %v35
  %v75 = vunpack.c.l.b16 %v36
  %v76 = vunpack.c.l.b16 %v37
  %v77 = vunpack.c.l.b16 %v38
  %v78 = vunpack.c.l.b16 %v39
  %v79 = vunpack.c.l.b16 %v40
  %v80 = vunpack.c.l.b16 %v41
  %v81 = vunpack.c.l.b16 %v42
  %v82 = vunpack.c.l.b16 %v43
  %v83 = vunpack.c.l.b16 %v44
  %v84 = vunpack.c.l.b16 %v45
  %v85 = vunpack.c.l.b16 %v46
  %v86 = vunpack.c.l.b16 %v47
  %v87 = vunpack.c.l.b16 %v48
  %v88 = vunpack.c.l.b16 %v49
  %v89 = vpack.c.b16 %v74, %v73
  %v90 = vpack.c.b16 %v76, %v75
  %v91 = vpack.c.b16 %v78, %v77
  %v92 = vpack.c.b16 %v80, %v79
  %v93 = vpack.c.b16 %v82, %v81
  %v94 = vpack.c.b16 %v84, %v83
  %v95 = vpack.c.b16 %v86, %v85
  %v96 = vpack.c.b16 %v88, %v87
  %105 = vmatprep.subr.bf16.mxu0 0
  %106 = vmatpush1.bf16.msra.mxu0 %v96
  %107 = vmatprep.subr.bf16.mxu0 0
  %108 = vmatpush1.bf16.msra.mxu0 %v95
  %109 = vmatprep.subr.bf16.mxu0 0
  %110 = vmatpush1.bf16.msra.mxu0 %v94
  %111 = vmatprep.subr.bf16.mxu0 0
  %112 = vmatpush1.bf16.msra.mxu0 %v93
  %113 = vmatprep.subr.bf16.mxu0 0
  %114 = vmatpush1.bf16.msra.mxu0 %v92
  %115 = vmatprep.subr.bf16.mxu0 0
  %116 = vmatpush1.bf16.msra.mxu0 %v91
  %117 = vmatprep.subr.bf16.mxu0 0
  %118 = vmatpush1.bf16.msra.mxu0 %v90
  %119 = vmatprep.subr.bf16.mxu0 0
  %120 = vmatpush1.bf16.msra.mxu0 %v89
  %121 = vmatprep.subr.bf16.mxu0 0
  %122 = vmatpush2.bf16.msra.mxu0 0
  %123 = vmatprep.subr.bf16.mxu0 0
  %124 = vmatpush2.bf16.msra.mxu0 0
  %125 = vmatprep.subr.bf16.mxu0 0
  %126 = vmatpush2.bf16.msra.mxu0 0
  %127 = vmatprep.subr.bf16.mxu0 0
  %128 = vmatpush2.bf16.msra.mxu0 0
  %129 = vmatprep.subr.bf16.mxu0 0
  %130 = vmatpush2.bf16.msra.mxu0 0
  %131 = vmatprep.subr.bf16.mxu0 0
  %132 = vmatpush2.bf16.msra.mxu0 0
  %133 = vmatprep.subr.bf16.mxu0 0
  %134 = vmatpush2.bf16.msra.mxu0 0
  %135 = vmatprep.subr.bf16.mxu0 0
  %136 = vmatpush2.bf16.msra.mxu0 0
  %137 = vmatprep.mubr.bf16.mxu0 0
  %138 = vmatmul.mubr.bf16.gmra.mxu0 %v33
  %v139 = vpop.f32.mrf.mxu0
  %v140 = vadd.f32 %v55, %v139
  %v141 = vpop.f32.mrf.mxu0
  %v142 = vpop.f32.mrf.mxu0
  %v143 = vpop.f32.mrf.mxu0
  %144 = vdwg.mxu0
  %vm145 = vcmp.gt.f32.partialorder %v140, 0.0
  %v146 = vmul.f32 %v140, 0.2
  %v147 = vsel %vm145, %v140, %v146
  %v148 = vpack.c.bf16 %v147, %v147
  %v149 = vld [vmem:[%s3] sm:$0xf]
  %v150 = vld [vmem:[%s3 + $0x4] sm:$0xf]
  %v151 = vld [vmem:[%s3 + $0x8] sm:$0xf]
  %v152 = vld [vmem:[%s3 + $0xc] sm:$0xf]
  %v153 = vld [vmem:[%s3 + $0x10] sm:$0xf]
  %v154 = vld [vmem:[%s3 + $0x14] sm:$0xf]
  %v155 = vld [vmem:[%s3 + $0x18] sm:$0xf]
  %v156 = vld [vmem:[%s3 + $0x1c] sm:$0xf]
  %v157 = vld [vmem:[%s3 + $0x20] sm:$0xf]
  %v158 = vld [vmem:[%s3 + $0x24] sm:$0xf]
  %v159 = vld [vmem:[%s3 + $0x28] sm:$0xf]
  %v160 = vld [vmem:[%s3 + $0x2c] sm:$0xf]
  %v161 = vld [vmem:[%s3 + $0x30] sm:$0xf]
  %v162 = vld [vmem:[%s3 + $0x34] sm:$0xf]
  %v163 = vld [vmem:[%s3 + $0x38] sm:$0xf]
  %v164 = vld [vmem:[%s3 + $0x3c] sm:$0xf]
  %v165 = vld [vmem:[%s4] sm:$0x1]
  %v167 = vlaneseq
  %v168 = vshrl.u32 %v167, 7
  %v169 = vsub.s32 0, %v168
  %v170 = vrot.slane %v165, %v169
  %v188 = vunpack.c.l.b16 %v149
  %v189 = vunpack.c.l.b16 %v150
  %v190 = vunpack.c.l.b16 %v151
  %v191 = vunpack.c.l.b16 %v152
  %v192 = vunpack.c.l.b16 %v153
  %v193 = vunpack.c.l.b16 %v154
  %v194 = vunpack.c.l.b16 %v155
  %v195 = vunpack.c.l.b16 %v156
  %v196 = vunpack.c.l.b16 %v157
  %v197 = vunpack.c.l.b16 %v158
  %v198 = vunpack.c.l.b16 %v159
  %v199 = vunpack.c.l.b16 %v160
  %v200 = vunpack.c.l.b16 %v161
  %v201 = vunpack.c.l.b16 %v162
  %v202 = vunpack.c.l.b16 %v163
  %v203 = vunpack.c.l.b16 %v164
  %v204 = vpack.c.b16 %v189, %v188
  %v205 = vpack.c.b16 %v191, %v190
  %v206 = vpack.c.b16 %v193, %v192
  %v207 = vpack.c.b16 %v195, %v194
  %v208 = vpack.c.b16 %v197, %v196
  %v209 = vpack.c.b16 %v199, %v198
  %v210 = vpack.c.b16 %v201, %v200
  %v211 = vpack.c.b16 %v203, %v202
  %220 = vmatprep.subr.bf16.mxu0 0
  %221 = vmatpush1.bf16.msra.mxu0 %v211
  %222 = vmatprep.subr.bf16.mxu0 0
  %223 = vmatpush1.bf16.msra.mxu0 %v210
  %224 = vmatprep.subr.bf16.mxu0 0
  %225 = vmatpush1.bf16.msra.mxu0 %v209
  %226 = vmatprep.subr.bf16.mxu0 0
  %227 = vmatpush1.bf16.msra.mxu0 %v208
  %228 = vmatprep.subr.bf16.mxu0 0
  %229 = vmatpush1.bf16.msra.mxu0 %v207
  %230 = vmatprep.subr.bf16.mxu0 0
  %231 = vmatpush1.bf16.msra.mxu0 %v206
  %232 = vmatprep.subr.bf16.mxu0 0
  %233 = vmatpush1.bf16.msra.mxu0 %v205
  %234 = vmatprep.subr.bf16.mxu0 0
  %235 = vmatpush1.bf16.msra.mxu0 %v204
  %236 = vmatprep.subr.bf16.mxu0 0
  %237 = vmatpush2.bf16.msra.mxu0 0
  %238 = vmatprep.subr.bf16.mxu0 0
  %239 = vmatpush2.bf16.msra.mxu0 0
  %240 = vmatprep.subr.bf16.mxu0 0
  %241 = vmatpush2.bf16.msra.mxu0 0
  %242 = vmatprep.subr.bf16.mxu0 0
  %243 = vmatpush2.bf16.msra.mxu0 0
  %244 = vmatprep.subr.bf16.mxu0 0
  %245 = vmatpush2.bf16.msra.mxu0 0
  %246 = vmatprep.subr.bf16.mxu0 0
  %247 = vmatpush2.bf16.msra.mxu0 0
  %248 = vmatprep.subr.bf16.mxu0 0
  %249 = vmatpush2.bf16.msra.mxu0 0
  %250 = vmatprep.subr.bf16.mxu0 0
  %251 = vmatpush2.bf16.msra.mxu0 0
  %252 = vmatprep.mubr.bf16.mxu0 0
  %253 = vmatmul.mubr.bf16.gmra.mxu0 %v148
  %v254 = vpop.f32.mrf.mxu0
  %v255 = vadd.f32 %v170, %v254
  %v256 = vpop.f32.mrf.mxu0
  %v257 = vpop.f32.mrf.mxu0
  %v258 = vpop.f32.mrf.mxu0
  %259 = vdwg.mxu0
  %vm260 = vcmp.gt.f32.partialorder %v255, 0.0
  %v261 = vmul.f32 %v255, 0.2
  %v262 = vsel %vm260, %v255, %v261
  %v263 = vpack.c.bf16 %v262, %v262
  %v264 = vld [vmem:[%s5] sm:$0xf]
  %v265 = vld [vmem:[%s5 + $0x4] sm:$0xf]
  %v266 = vld [vmem:[%s5 + $0x8] sm:$0xf]
  %v267 = vld [vmem:[%s5 + $0xc] sm:$0xf]
  %v268 = vld [vmem:[%s5 + $0x10] sm:$0xf]
  %v269 = vld [vmem:[%s5 + $0x14] sm:$0xf]
  %v270 = vld [vmem:[%s5 + $0x18] sm:$0xf]
  %v271 = vld [vmem:[%s5 + $0x1c] sm:$0xf]
  %v272 = vld [vmem:[%s5 + $0x20] sm:$0xf]
  %v273 = vld [vmem:[%s5 + $0x24] sm:$0xf]
  %v274 = vld [vmem:[%s5 + $0x28] sm:$0xf]
  %v275 = vld [vmem:[%s5 + $0x2c] sm:$0xf]
  %v276 = vld [vmem:[%s5 + $0x30] sm:$0xf]
  %v277 = vld [vmem:[%s5 + $0x34] sm:$0xf]
  %v278 = vld [vmem:[%s5 + $0x38] sm:$0xf]
  %v279 = vld [vmem:[%s5 + $0x3c] sm:$0xf]
  %v280 = vld [vmem:[%s6] sm:$0x1]
  %v282 = vlaneseq
  %v283 = vshrl.u32 %v282, 7
  %v284 = vsub.s32 0, %v283
  %v285 = vrot.slane %v280, %v284
  %v303 = vunpack.c.l.b16 %v264
  %v304 = vunpack.c.l.b16 %v265
  %v305 = vunpack.c.l.b16 %v266
  %v306 = vunpack.c.l.b16 %v267
  %v307 = vunpack.c.l.b16 %v268
  %v308 = vunpack.c.l.b16 %v269
  %v309 = vunpack.c.l.b16 %v270
  %v310 = vunpack.c.l.b16 %v271
  %v311 = vunpack.c.l.b16 %v272
  %v312 = vunpack.c.l.b16 %v273
  %v313 = vunpack.c.l.b16 %v274
  %v314 = vunpack.c.l.b16 %v275
  %v315 = vunpack.c.l.b16 %v276
  %v316 = vunpack.c.l.b16 %v277
  %v317 = vunpack.c.l.b16 %v278
  %v318 = vunpack.c.l.b16 %v279
  %v319 = vpack.c.b16 %v304, %v303
  %v320 = vpack.c.b16 %v306, %v305
  %v321 = vpack.c.b16 %v308, %v307
  %v322 = vpack.c.b16 %v310, %v309
  %v323 = vpack.c.b16 %v312, %v311
  %v324 = vpack.c.b16 %v314, %v313
  %v325 = vpack.c.b16 %v316, %v315
  %v326 = vpack.c.b16 %v318, %v317
  %335 = vmatprep.subr.bf16.mxu0 0
  %336 = vmatpush1.bf16.msra.mxu0 %v326
  %337 = vmatprep.subr.bf16.mxu0 0
  %338 = vmatpush1.bf16.msra.mxu0 %v325
  %339 = vmatprep.subr.bf16.mxu0 0
  %340 = vmatpush1.bf16.msra.mxu0 %v324
  %341 = vmatprep.subr.bf16.mxu0 0
  %342 = vmatpush1.bf16.msra.mxu0 %v323
  %343 = vmatprep.subr.bf16.mxu0 0
  %344 = vmatpush1.bf16.msra.mxu0 %v322
  %345 = vmatprep.subr.bf16.mxu0 0
  %346 = vmatpush1.bf16.msra.mxu0 %v321
  %347 = vmatprep.subr.bf16.mxu0 0
  %348 = vmatpush1.bf16.msra.mxu0 %v320
  %349 = vmatprep.subr.bf16.mxu0 0
  %350 = vmatpush1.bf16.msra.mxu0 %v319
  %351 = vmatprep.subr.bf16.mxu0 0
  %352 = vmatpush2.bf16.msra.mxu0 0
  %353 = vmatprep.subr.bf16.mxu0 0
  %354 = vmatpush2.bf16.msra.mxu0 0
  %355 = vmatprep.subr.bf16.mxu0 0
  %356 = vmatpush2.bf16.msra.mxu0 0
  %357 = vmatprep.subr.bf16.mxu0 0
  %358 = vmatpush2.bf16.msra.mxu0 0
  %359 = vmatprep.subr.bf16.mxu0 0
  %360 = vmatpush2.bf16.msra.mxu0 0
  %361 = vmatprep.subr.bf16.mxu0 0
  %362 = vmatpush2.bf16.msra.mxu0 0
  %363 = vmatprep.subr.bf16.mxu0 0
  %364 = vmatpush2.bf16.msra.mxu0 0
  %365 = vmatprep.subr.bf16.mxu0 0
  %366 = vmatpush2.bf16.msra.mxu0 0
  %367 = vmatprep.mubr.bf16.mxu0 0
  %368 = vmatmul.mubr.bf16.gmra.mxu0 %v263
  %v369 = vpop.f32.mrf.mxu0
  %v370 = vadd.f32 %v285, %v369
  %v371 = vpop.f32.mrf.mxu0
  %v372 = vpop.f32.mrf.mxu0
  %v373 = vpop.f32.mrf.mxu0
  %374 = vdwg.mxu0
  %vm375 = vcmp.gt.f32.partialorder %v370, 0.0
  %v376 = vmul.f32 %v370, 0.2
  %v377 = vsel %vm375, %v370, %v376
  %v378 = vpack.c.bf16 %v377, %v377
  %v379 = vld [vmem:[%s7] sm:$0xf]
  %v380 = vld [vmem:[%s7 + $0x4] sm:$0xf]
  %v381 = vld [vmem:[%s7 + $0x8] sm:$0xf]
  %v382 = vld [vmem:[%s7 + $0xc] sm:$0xf]
  %v383 = vld [vmem:[%s7 + $0x10] sm:$0xf]
  %v384 = vld [vmem:[%s7 + $0x14] sm:$0xf]
  %v385 = vld [vmem:[%s7 + $0x18] sm:$0xf]
  %v386 = vld [vmem:[%s7 + $0x1c] sm:$0xf]
  %v387 = vld [vmem:[%s7 + $0x20] sm:$0xf]
  %v388 = vld [vmem:[%s7 + $0x24] sm:$0xf]
  %v389 = vld [vmem:[%s7 + $0x28] sm:$0xf]
  %v390 = vld [vmem:[%s7 + $0x2c] sm:$0xf]
  %v391 = vld [vmem:[%s7 + $0x30] sm:$0xf]
  %v392 = vld [vmem:[%s7 + $0x34] sm:$0xf]
  %v393 = vld [vmem:[%s7 + $0x38] sm:$0xf]
  %v394 = vld [vmem:[%s7 + $0x3c] sm:$0xf]
  %v395 = vld [vmem:[%s8] sm:$0x1]
  %v397 = vlaneseq
  %v398 = vshrl.u32 %v397, 7
  %v399 = vsub.s32 0, %v398
  %v400 = vrot.slane %v395, %v399
  %v418 = vunpack.c.l.b16 %v379
  %v419 = vunpack.c.l.b16 %v380
  %v420 = vunpack.c.l.b16 %v381
  %v421 = vunpack.c.l.b16 %v382
  %v422 = vunpack.c.l.b16 %v383
  %v423 = vunpack.c.l.b16 %v384
  %v424 = vunpack.c.l.b16 %v385
  %v425 = vunpack.c.l.b16 %v386
  %v426 = vunpack.c.l.b16 %v387
  %v427 = vunpack.c.l.b16 %v388
  %v428 = vunpack.c.l.b16 %v389
  %v429 = vunpack.c.l.b16 %v390
  %v430 = vunpack.c.l.b16 %v391
  %v431 = vunpack.c.l.b16 %v392
  %v432 = vunpack.c.l.b16 %v393
  %v433 = vunpack.c.l.b16 %v394
  %v434 = vpack.c.b16 %v419, %v418
  %v435 = vpack.c.b16 %v421, %v420
  %v436 = vpack.c.b16 %v423, %v422
  %v437 = vpack.c.b16 %v425, %v424
  %v438 = vpack.c.b16 %v427, %v426
  %v439 = vpack.c.b16 %v429, %v428
  %v440 = vpack.c.b16 %v431, %v430
  %v441 = vpack.c.b16 %v433, %v432
  %450 = vmatprep.subr.bf16.mxu0 0
  %451 = vmatpush1.bf16.msra.mxu0 %v441
  %452 = vmatprep.subr.bf16.mxu0 0
  %453 = vmatpush1.bf16.msra.mxu0 %v440
  %454 = vmatprep.subr.bf16.mxu0 0
  %455 = vmatpush1.bf16.msra.mxu0 %v439
  %456 = vmatprep.subr.bf16.mxu0 0
  %457 = vmatpush1.bf16.msra.mxu0 %v438
  %458 = vmatprep.subr.bf16.mxu0 0
  %459 = vmatpush1.bf16.msra.mxu0 %v437
  %460 = vmatprep.subr.bf16.mxu0 0
  %461 = vmatpush1.bf16.msra.mxu0 %v436
  %462 = vmatprep.subr.bf16.mxu0 0
  %463 = vmatpush1.bf16.msra.mxu0 %v435
  %464 = vmatprep.subr.bf16.mxu0 0
  %465 = vmatpush1.bf16.msra.mxu0 %v434
  %466 = vmatprep.subr.bf16.mxu0 0
  %467 = vmatpush2.bf16.msra.mxu0 0
  %468 = vmatprep.subr.bf16.mxu0 0
  %469 = vmatpush2.bf16.msra.mxu0 0
  %470 = vmatprep.subr.bf16.mxu0 0
  %471 = vmatpush2.bf16.msra.mxu0 0
  %472 = vmatprep.subr.bf16.mxu0 0
  %473 = vmatpush2.bf16.msra.mxu0 0
  %474 = vmatprep.subr.bf16.mxu0 0
  %475 = vmatpush2.bf16.msra.mxu0 0
  %476 = vmatprep.subr.bf16.mxu0 0
  %477 = vmatpush2.bf16.msra.mxu0 0
  %478 = vmatprep.subr.bf16.mxu0 0
  %479 = vmatpush2.bf16.msra.mxu0 0
  %480 = vmatprep.subr.bf16.mxu0 0
  %481 = vmatpush2.bf16.msra.mxu0 0
  %482 = vmatprep.mubr.bf16.mxu0 0
  %483 = vmatmul.mubr.bf16.gmra.mxu0 %v378
  %v484 = vpop.f32.mrf.mxu0
  %v485 = vadd.f32 %v400, %v484
  %v486 = vpop.f32.mrf.mxu0
  %v487 = vpop.f32.mrf.mxu0
  %v488 = vpop.f32.mrf.mxu0
  %489 = vdwg.mxu0
  %490 = vst [vmem:[%s9] sm:$0xff] %v485
  // Predicated region
  $region38: #{_mapping_network_impl.1} parent=0 // pred_check
    _
  $region39: #{_mapping_network_impl.1} parent=0 // pred_check_branch
    %492 = sbr.rel (0) target = $region41
  $region40: #{_mapping_network_impl.1} parent=0 // pred_region
    _
  $region41: #{_mapping_network_impl.1} parent=0 // pred_fallthru
    _
  // Predicated region
  $region42: #{_mapping_network_impl.1} parent=0 // pred_check
    _
  $region43: #{_mapping_network_impl.1} parent=0 // pred_check_branch
    %494 = sbr.rel (0) target = $region45
  $region44: #{_mapping_network_impl.1} parent=0 // pred_region
    _
  $region45: #{_mapping_network_impl.1} parent=0 // pred_fallthru
    _

</llo_original>
